<compile_context>
chip_gen: v7x
topology: tpu7x:2x2x1
jax: 0.10.0
libtpu: 0.0.40
codegen_flags: <defaults>
</compile_context>

<pallas_src>
import math
import jax
import jax.numpy as jnp
from jax.experimental import pallas as pl
from jax.experimental.pallas import tpu as pltpu


def crgnn_fused_kernel(x_ref, w1_ref, b1_ref, w2_ref, b2_ref, o_ref):
    """Single fused invocation: all V channels at once.

    x_ref:  (N, V)       input data
    w1_ref: (V, V*nh)    hidden weights with skeleton + adj folded in,
                         w1_ref[j, c*nh+h] = adj[j,c] * W1_eff[c,j,h]
    b1_ref: (1, V*nh)    hidden bias, channel-major flattened
    w2_ref: (V*nh, V)    block-diagonal output weights with neuron gate folded,
                         w2_ref[c*nh+h, c'] = (c==c') * neurons[h,c] * W2[c,h,0]
    b2_ref: (1, V)       output bias
    o_ref:  (N, V)       output
    """
    # Hidden layer for ALL channels: one lane-dense MXU matmul + bias + tanh (EUP).
    h = jnp.tanh(
        jnp.dot(x_ref[...], w1_ref[...], preferred_element_type=jnp.float32)
        + b1_ref[...])                                           # (N, V*nh)

    # Output layer for ALL channels: one block-diagonal matmul -> (N, V).
    o = jnp.dot(h, w2_ref[...], preferred_element_type=jnp.float32) \
        + b2_ref[...]
    o_ref[...] = o.astype(o_ref.dtype)


def crgnn_forward(data, adj, w1, b1, neurons, w2, b2):
    """Pallas wrapper. data: (N, V). Returns (adj, output) with output (N, V).

    The skeleton permutation (identity with column c removed, i.e. the CRGNN
    `reshape_skeleton` buffer), the adjacency column scaling, and the neuron
    gating are all folded into the weight relayout below, so the kernel body
    is just matmul -> tanh -> matmul.
    """
    N, V = data.shape
    nh = w1.shape[-1]

    # ---- wrapper-side weight re-layout (cheap, batch-independent) ----
    # Skeleton fold without a matmul: W1_eff[c, j, h] = w1[c, j, h]   if j < c
    #                                               = w1[c, j-1, h] if j > c
    #                                               = 0             if j == c
    jidx = jnp.arange(V)
    cidx = jnp.arange(V)[:, None]
    src = jnp.clip(jnp.where(jidx[None, :] < cidx, jidx[None, :],
                             jidx[None, :] - 1), 0, V - 2)          # (V, V)
    mask = (jidx[None, :] != cidx).astype(w1.dtype)                 # (V, V)
    w1_eff = jnp.take_along_axis(w1, src[:, :, None], axis=1) * mask[:, :, None]  # (V,V,nh)

    # Fold adjacency column scaling and flatten so the kernel contracts over
    # the input-feature axis j and produces one lane-dense (N, V*nh) block.
    # w1_flat[j, c*nh+h] = adj[j, c] * W1_eff[c, j, h]
    w1_flat = (jnp.transpose(w1_eff, (1, 0, 2)) * adj[:, :, None]).reshape(V, V * nh)

    b1_flat = b1.reshape(1, V * nh)

    # Fold neuron gating into the output weight, then build the block-diagonal
    # layer over all channels: w2_block[c*nh+h, c'] = (c==c')*neurons[h,c]*w2[c,h,0]
    w2_gated = w2[:, :, 0] * neurons.T                              # (V, nh)
    w2_block = (jnp.eye(V, dtype=w2.dtype)[:, None, :]
                * w2_gated[:, :, None]).reshape(V * nh, V)
    b2_row = b2.reshape(1, V)

    out = pl.pallas_call(
        crgnn_fused_kernel,
        out_shape=jax.ShapeDtypeStruct((N, V), jnp.float32),
        in_specs=[pl.BlockSpec(memory_space=pltpu.MemorySpace.VMEM)] * 5,
        out_specs=pl.BlockSpec(memory_space=pltpu.MemorySpace.VMEM),
    )(data, w1_flat, b1_flat, w2_block, b2_row)

    return adj, out


def reference_forward(data, adj, skel, w1, b1, neurons, w2, b2):
    """Pure-JAX reference replicating the PyTorch forward exactly."""
    scaled = adj.T[:, :, None] * skel                            # (V, V, V-1)
    xp = jnp.einsum('nj,cjk->cnk', data, scaled)                 # (V, N, V-1)
    h = jnp.einsum('cnk,ckh->cnh', xp, w1) + b1[:, None, :]      # (V, N, nh)
    h = jnp.tanh(h)
    hs = h * neurons.T[:, None, :]                               # (V, N, nh)
    o = jnp.einsum('cnh,cho->cno', hs, w2) + b2[:, None, :]      # (V, N, 1)
    return o[:, :, 0].T                                          # (N, V)


def make_skeleton(V):
    """reshape_skeleton[c] = identity with column c removed, shape (V, V, V-1)."""
    eye = jnp.eye(V, dtype=jnp.float32)
    return jnp.stack([jnp.delete(eye, c, axis=1) for c in range(V)], axis=0)


if __name__ == "__main__":
    # small shapes: batch N=8 time points, V=16 brain regions, nh=32 hidden units
    N, V, NH = 8, 16, 32
    MAX_DIM = V - 1

    key = jax.random.PRNGKey(0)
    k_data, k_w1, k_b1, k_w2, k_b2, k_adj, k_neu = jax.random.split(key, 7)

    data = jax.random.normal(k_data, (N, V), dtype=jnp.float32)

    # deterministic parameter init mirroring Linear3D.reset_parameters
    stdv1 = 1.0 / math.sqrt(MAX_DIM)
    w1 = jax.random.uniform(k_w1, (V, MAX_DIM, NH), jnp.float32, -stdv1, stdv1)
    b1 = jax.random.uniform(k_b1, (V, NH), jnp.float32, -stdv1, stdv1)
    stdv2 = 1.0 / math.sqrt(NH)
    w2 = jax.random.uniform(k_w2, (V, NH, 1), jnp.float32, -stdv2, stdv2)
    b2 = jax.random.uniform(k_b2, (V, 1), jnp.float32, -stdv2, stdv2)
    adj = jax.random.normal(k_adj, (V, V), dtype=jnp.float32)        # adj_matrix ~ N(0,1)
    neurons = jax.random.normal(k_neu, (NH, V), dtype=jnp.float32)   # neurons ~ N(0,1)

    skel = make_skeleton(V)                                          # (V, V, V-1)

    adj_out, out = jax.jit(crgnn_forward)(data, adj, w1, b1, neurons, w2, b2)
    out = jax.block_until_ready(out)

    ref = reference_forward(data, adj, skel, w1, b1, neurons, w2, b2)
    assert out.shape == (N, V)
    assert jnp.allclose(out, ref, atol=1e-5, rtol=1e-5), "mismatch vs reference"
    assert jnp.allclose(adj_out, adj), "adj_matrix must be returned unchanged"

    print("KERNEL_OK")
</pallas_src>

<mosaic_0001>
module attributes {stable_mosaic.version = 11 : i64} {
  func.func @crgnn_fused_kernel(%arg0: memref<8x16xf32, #tpu.memory_space<vmem>>, %arg1: memref<16x512xf32, #tpu.memory_space<vmem>>, %arg2: memref<1x512xf32, #tpu.memory_space<vmem>>, %arg3: memref<512x16xf32, #tpu.memory_space<vmem>>, %arg4: memref<1x16xf32, #tpu.memory_space<vmem>>, %arg5: memref<8x16xf32, #tpu.memory_space<vmem>>) attributes {dimension_semantics = [], scalar_prefetch = 0 : i64, scratch_operands = 0 : i64, tpu.core_type = #tpu.core_type<tc>} {
    %c0 = arith.constant 0 : index
    %c0_0 = arith.constant 0 : index
    %0 = vector.load %arg0[%c0, %c0_0] : memref<8x16xf32, #tpu.memory_space<vmem>>, vector<8x16xf32>
    %c0_1 = arith.constant 0 : index
    %c0_2 = arith.constant 0 : index
    %1 = vector.load %arg1[%c0_1, %c0_2] : memref<16x512xf32, #tpu.memory_space<vmem>>, vector<16x512xf32>
    %cst = arith.constant dense<0.000000e+00> : vector<8x512xf32>
    %2 = tpu.matmul %0, %1, %cst {dimension_numbers = #tpu.dot_dimension_numbers<[1], [0], [0], [1], [0, 0, 1, 1], [], []>} : vector<8x16xf32>, vector<16x512xf32>, vector<8x512xf32> -> vector<8x512xf32>
    %c0_3 = arith.constant 0 : index
    %c0_4 = arith.constant 0 : index
    %3 = vector.load %arg2[%c0_3, %c0_4] : memref<1x512xf32, #tpu.memory_space<vmem>>, vector<1x512xf32>
    %4 = vector.broadcast %3 : vector<1x512xf32> to vector<8x512xf32>
    %5 = arith.addf %2, %4 : vector<8x512xf32>
    %6 = math.tanh %5 : vector<8x512xf32>
    %c0_5 = arith.constant 0 : index
    %c0_6 = arith.constant 0 : index
    %7 = vector.load %arg3[%c0_5, %c0_6] : memref<512x16xf32, #tpu.memory_space<vmem>>, vector<512x16xf32>
    %cst_7 = arith.constant dense<0.000000e+00> : vector<8x16xf32>
    %8 = tpu.matmul %6, %7, %cst_7 {dimension_numbers = #tpu.dot_dimension_numbers<[1], [0], [0], [1], [0, 0, 1, 1], [], []>} : vector<8x512xf32>, vector<512x16xf32>, vector<8x16xf32> -> vector<8x16xf32>
    %c0_8 = arith.constant 0 : index
    %c0_9 = arith.constant 0 : index
    %9 = vector.load %arg4[%c0_8, %c0_9] : memref<1x16xf32, #tpu.memory_space<vmem>>, vector<1x16xf32>
    %10 = vector.broadcast %9 : vector<1x16xf32> to vector<8x16xf32>
    %11 = arith.addf %8, %10 : vector<8x16xf32>
    %c0_10 = arith.constant 0 : index
    %c0_11 = arith.constant 0 : index
    %12 = vector.load %arg5[%c0_10, %c0_11] : memref<8x16xf32, #tpu.memory_space<vmem>>, vector<8x16xf32>
    tpu.vector_store %arg5[%c0_10, %c0_11], %11 {strides = array<i32>} : memref<8x16xf32, #tpu.memory_space<vmem>>, vector<8x16xf32>,
    return
  }
}

</mosaic_0001>

<llo_original>
// kernel: crgnn_forward.1
$region0: #{crgnn_forward.1}
  #allocation0 [shape = 'u32[]', space=smem, size = 0x4, offset = 0x4, fixed_abs, tag = 'smem constant byte address 0x4 - core index']
  #allocation1 [shape = 'u32[144,128]{1,0:T(1,128)}', space=vmem, size = 0x12000, scoped, tag = 'internal scratch']
  %s0 = inlined_call_operand.vmem [shape: f32[8,16], index: 0, kind: input, shape index: {}]
  %s1 = inlined_call_operand.vmem [shape: f32[16,512], index: 1, kind: input, shape index: {}]
  %s2 = inlined_call_operand.vmem [shape: f32[1,512], index: 2, kind: input, shape index: {}]
  %s3 = inlined_call_operand.vmem [shape: f32[512,16], index: 3, kind: input, shape index: {}]
  %s4 = inlined_call_operand.vmem [shape: f32[1,16], index: 4, kind: input, shape index: {}]
  %s5 = inlined_call_operand.hbm [shape: f32[8,16], index: 5, kind: output, shape index: {}]
  %s6 = sld [smem:[#allocation0]]
  $region30: #{crgnn_forward.1} parent=0
    _
  %s8 = ssub.s32 1, %s6
  %s9 = scalar_select 0, %s8, %s6
  $region1: #{crgnn_forward.1} parent=0
    #allocation2 [shape = 'u8[4096]{0}', space=vmem, size = 0x1000, scoped, tag = 'output window, operand 0, single buffered']
    #allocation3 [shape = 's32[1]{0}', space=sflag, size = 0x4, scoped, tag = 'scoped memory for crgnn_forward.1']
    %10 = vsyncpa [#allocation3], 0
    // Predicated region
    $region2: #{crgnn_forward.1} parent=1 // pred_check
      _
    $region3: #{crgnn_forward.1} parent=1 // pred_check_branch
      %12 = sbr.rel (0) target = $region5
    $region4: #{crgnn_forward.1} parent=1 // pred_region
      _
    $region5: #{crgnn_forward.1} parent=1 // pred_fallthru
      _
    // Predicated region
    $region6: #{crgnn_forward.1} parent=1 // pred_check
      _
    $region7: #{crgnn_forward.1} parent=1 // pred_check_branch
      %14 = sbr.rel (0) target = $region9
    $region8: #{crgnn_forward.1} parent=1 // pred_region
      _
    $region9: #{crgnn_forward.1} parent=1 // pred_fallthru
      _
    // Predicated region
    $region10: #{crgnn_forward.1} parent=1 // pred_check
      _
    $region11: #{crgnn_forward.1} parent=1 // pred_check_branch
      %16 = sbr.rel (0) target = $region13
    $region12: #{crgnn_forward.1} parent=1 // pred_region
      _
    $region13: #{crgnn_forward.1} parent=1 // pred_fallthru
      _
    // Predicated region
    $region14: #{crgnn_forward.1} parent=1 // pred_check
      _
    $region15: #{crgnn_forward.1} parent=1 // pred_check_branch
      %18 = sbr.rel (0) target = $region17
    $region16: #{crgnn_forward.1} parent=1 // pred_region
      _
    $region17: #{crgnn_forward.1} parent=1 // pred_fallthru
      _
    // Predicated region
    $region18: #{crgnn_forward.1} parent=1 // pred_check
      _
    $region19: #{crgnn_forward.1} parent=1 // pred_check_branch
      %20 = sbr.rel (0) target = $region21
    $region20: #{crgnn_forward.1} parent=1 // pred_region
      _
    $region21: #{crgnn_forward.1} parent=1 // pred_fallthru
      _
    %v21 = vld [vmem:[%s0] sm:$0xff]
    %v22 = vld [vmem:[%s1] sm:$0xff]
    %v23 = vld [vmem:[%s1 + $0x8] sm:$0xff]
    %v24 = vld [vmem:[%s1 + $0x10] sm:$0xff]
    %v25 = vld [vmem:[%s1 + $0x18] sm:$0xff]
    %v26 = vld [vmem:[%s1 + $0x20] sm:$0xff]
    %v27 = vld [vmem:[%s1 + $0x28] sm:$0xff]
    %v28 = vld [vmem:[%s1 + $0x30] sm:$0xff]
    %v29 = vld [vmem:[%s1 + $0x38] sm:$0xff]
    %v30 = vld [vmem:[%s2] sm:$0xf]
    %v32 = vlaneseq
    %v33 = vshrl.u32 %v32, 7
    %v34 = vsub.s32 0, %v33
    %v35 = vrot.slane %v30, %v34
    %v36 = vlaneseq
    %v37 = vshrl.u32 %v36, 7
    %v38 = vsub.s32 1, %v37
    %v39 = vrot.slane %v30, %v38
    %v40 = vlaneseq
    %v41 = vshrl.u32 %v40, 7
    %v42 = vsub.s32 2, %v41
    %v43 = vrot.slane %v30, %v42
    %v44 = vlaneseq
    %v45 = vshrl.u32 %v44, 7
    %v46 = vsub.s32 3, %v45
    %v47 = vrot.slane %v30, %v46
    %vm52 = vcmask 130048
    %v54 = vsel %vm52, %v21, 0
    %56 = vmatprep.subr.mxu0 %v23
    %57 = vmatpush1.msra.mxu0 %v22
    %58 = vmatprep.subr.mxu0 %v27
    %59 = vmatpush1.msra.mxu0 %v26
    %60 = vmatprep.subr.mxu0 0.0
    %61 = vmatpush1.msra.mxu0 0.0
    %62 = vmatprep.subr.mxu0 0.0
    %63 = vmatpush1.msra.mxu0 0.0
    %64 = vmatprep.subr.mxu0 0.0
    %65 = vmatpush1.msra.mxu0 0.0
    %66 = vmatprep.subr.mxu0 0.0
    %67 = vmatpush1.msra.mxu0 0.0
    %68 = vmatprep.subr.mxu0 0.0
    %69 = vmatpush1.msra.mxu0 0.0
    %70 = vmatprep.subr.mxu0 0.0
    %71 = vmatpush1.msra.mxu0 0.0
    %72 = vmatprep.subr.mxu0 0.0
    %73 = vmatpush1.msra.mxu0 0.0
    %74 = vmatprep.subr.mxu0 0.0
    %75 = vmatpush1.msra.mxu0 0.0
    %76 = vmatprep.subr.mxu0 0.0
    %77 = vmatpush1.msra.mxu0 0.0
    %78 = vmatprep.subr.mxu0 0.0
    %79 = vmatpush1.msra.mxu0 0.0
    %80 = vmatprep.subr.mxu0 0.0
    %81 = vmatpush1.msra.mxu0 0.0
    %82 = vmatprep.subr.mxu0 0.0
    %83 = vmatpush1.msra.mxu0 0.0
    %84 = vmatprep.subr.mxu0 0.0
    %85 = vmatpush1.msra.mxu0 0.0
    %86 = vmatprep.subr.mxu0 0.0
    %87 = vmatpush1.msra.mxu0 0.0
    %88 = vmatprep.subr.mxu0 0.0
    %89 = vmatpush1.msra.mxu0 0.0
    %90 = vmatprep.subr.mxu0 0.0
    %91 = vmatpush1.msra.mxu0 0.0
    %92 = vmatprep.subr.mxu0 0.0
    %93 = vmatpush1.msra.mxu0 0.0
    %94 = vmatprep.subr.mxu0 0.0
    %95 = vmatpush1.msra.mxu0 0.0
    %96 = vmatprep.subr.mxu0 0.0
    %97 = vmatpush1.msra.mxu0 0.0
    %98 = vmatprep.subr.mxu0 0.0
    %99 = vmatpush1.msra.mxu0 0.0
    %100 = vmatprep.subr.mxu0 0.0
    %101 = vmatpush1.msra.mxu0 0.0
    %102 = vmatprep.subr.mxu0 0.0
    %103 = vmatpush1.msra.mxu0 0.0
    %104 = vmatprep.subr.mxu0 0.0
    %105 = vmatpush1.msra.mxu0 0.0
    %106 = vmatprep.subr.mxu0 0.0
    %107 = vmatpush1.msra.mxu0 0.0
    %108 = vmatprep.subr.mxu0 0.0
    %109 = vmatpush1.msra.mxu0 0.0
    %110 = vmatprep.subr.mxu0 0.0
    %111 = vmatpush1.msra.mxu0 0.0
    %112 = vmatprep.subr.mxu0 0.0
    %113 = vmatpush1.msra.mxu0 0.0
    %114 = vmatprep.subr.mxu0 0.0
    %115 = vmatpush1.msra.mxu0 0.0
    %116 = vmatprep.subr.mxu0 0.0
    %117 = vmatpush1.msra.mxu0 0.0
    %118 = vmatprep.subr.mxu0 0.0
    %119 = vmatpush1.msra.mxu0 0.0
    %120 = vmatprep.mubr.f32.mxu0 0.0
    %121 = vmatmul.mubr.f32.gmra.mrb[0].mxu0 %v54
    %v122 = vpop.f32.mrb[0].mxu0
    %v123 = vadd.f32 %v35, %v122
    %v124 = vpop.f32.mrb[0].mxu0
    %v125 = vadd.f32 %v39, %v124
    %126 = vdwg.mxu0
    %127 = vmatprep.subr.mxu0 %v25
    %128 = vmatpush1.msra.mxu0 %v24
    %129 = vmatprep.subr.mxu0 %v29
    %130 = vmatpush1.msra.mxu0 %v28
    %131 = vmatprep.subr.mxu0 0.0
    %132 = vmatpush1.msra.mxu0 0.0
    %133 = vmatprep.subr.mxu0 0.0
    %134 = vmatpush1.msra.mxu0 0.0
    %135 = vmatprep.subr.mxu0 0.0
    %136 = vmatpush1.msra.mxu0 0.0
    %137 = vmatprep.subr.mxu0 0.0
    %138 = vmatpush1.msra.mxu0 0.0
    %139 = vmatprep.subr.mxu0 0.0
    %140 = vmatpush1.msra.mxu0 0.0
    %141 = vmatprep.subr.mxu0 0.0
    %142 = vmatpush1.msra.mxu0 0.0
    %143 = vmatprep.subr.mxu0 0.0
    %144 = vmatpush1.msra.mxu0 0.0
    %145 = vmatprep.subr.mxu0 0.0
    %146 = vmatpush1.msra.mxu0 0.0
    %147 = vmatprep.subr.mxu0 0.0
    %148 = vmatpush1.msra.mxu0 0.0
    %149 = vmatprep.subr.mxu0 0.0
    %150 = vmatpush1.msra.mxu0 0.0
    %151 = vmatprep.subr.mxu0 0.0
    %152 = vmatpush1.msra.mxu0 0.0
    %153 = vmatprep.subr.mxu0 0.0
    %154 = vmatpush1.msra.mxu0 0.0
    %155 = vmatprep.subr.mxu0 0.0
    %156 = vmatpush1.msra.mxu0 0.0
    %157 = vmatprep.subr.mxu0 0.0
    %158 = vmatpush1.msra.mxu0 0.0
    %159 = vmatprep.subr.mxu0 0.0
    %160 = vmatpush1.msra.mxu0 0.0
    %161 = vmatprep.subr.mxu0 0.0
    %162 = vmatpush1.msra.mxu0 0.0
    %163 = vmatprep.subr.mxu0 0.0
    %164 = vmatpush1.msra.mxu0 0.0
    %165 = vmatprep.subr.mxu0 0.0
    %166 = vmatpush1.msra.mxu0 0.0
    %167 = vmatprep.subr.mxu0 0.0
    %168 = vmatpush1.msra.mxu0 0.0
    %169 = vmatprep.subr.mxu0 0.0
    %170 = vmatpush1.msra.mxu0 0.0
    %171 = vmatprep.subr.mxu0 0.0
    %172 = vmatpush1.msra.mxu0 0.0
    %173 = vmatprep.subr.mxu0 0.0
    %174 = vmatpush1.msra.mxu0 0.0
    %175 = vmatprep.subr.mxu0 0.0
    %176 = vmatpush1.msra.mxu0 0.0
    %177 = vmatprep.subr.mxu0 0.0
    %178 = vmatpush1.msra.mxu0 0.0
    %179 = vmatprep.subr.mxu0 0.0
    %180 = vmatpush1.msra.mxu0 0.0
    %181 = vmatprep.subr.mxu0 0.0
    %182 = vmatpush1.msra.mxu0 0.0
    %183 = vmatprep.subr.mxu0 0.0
    %184 = vmatpush1.msra.mxu0 0.0
    %185 = vmatprep.subr.mxu0 0.0
    %186 = vmatpush1.msra.mxu0 0.0
    %187 = vmatprep.subr.mxu0 0.0
    %188 = vmatpush1.msra.mxu0 0.0
    %189 = vmatprep.subr.mxu0 0.0
    %190 = vmatpush1.msra.mxu0 0.0
    %191 = vmatprep.mubr.f32.mxu0 0.0
    %192 = vmatmul.mubr.f32.gmra.mrb[0].mxu0 %v54
    %v193 = vpop.f32.mrb[0].mxu0
    %v194 = vadd.f32 %v43, %v193
    %v195 = vpop.f32.mrb[0].mxu0
    %v196 = vadd.f32 %v47, %v195
    %197 = vdwg.mxu0
    %v198 = vtanh.pop %v123
    %v199 = vtanh.pop %v125
    %v200 = vtanh.pop %v194
    %v201 = vtanh.pop %v196
    %v202 = vld [vmem:[%s3] sm:$0xff]
    %v203 = vld [vmem:[%s3 + $0x8] sm:$0xff]
    %v204 = vld [vmem:[%s3 + $0x10] sm:$0xff]
    %v205 = vld [vmem:[%s3 + $0x18] sm:$0xff]
    %v206 = vld [vmem:[%s3 + $0x20] sm:$0xff]
    %v207 = vld [vmem:[%s3 + $0x28] sm:$0xff]
    %v208 = vld [vmem:[%s3 + $0x30] sm:$0xff]
    %v209 = vld [vmem:[%s3 + $0x38] sm:$0xff]
    %v210 = vld [vmem:[%s3 + $0x40] sm:$0xff]
    %v211 = vld [vmem:[%s3 + $0x48] sm:$0xff]
    %v212 = vld [vmem:[%s3 + $0x50] sm:$0xff]
    %v213 = vld [vmem:[%s3 + $0x58] sm:$0xff]
    %v214 = vld [vmem:[%s3 + $0x60] sm:$0xff]
    %v215 = vld [vmem:[%s3 + $0x68] sm:$0xff]
    %v216 = vld [vmem:[%s3 + $0x70] sm:$0xff]
    %v217 = vld [vmem:[%s3 + $0x78] sm:$0xff]
    %v218 = vld [vmem:[%s3 + $0x80] sm:$0xff]
    %v219 = vld [vmem:[%s3 + $0x88] sm:$0xff]
    %v220 = vld [vmem:[%s3 + $0x90] sm:$0xff]
    %v221 = vld [vmem:[%s3 + $0x98] sm:$0xff]
    %v222 = vld [vmem:[%s3 + $0xa0] sm:$0xff]
    %v223 = vld [vmem:[%s3 + $0xa8] sm:$0xff]
    %v224 = vld [vmem:[%s3 + $0xb0] sm:$0xff]
    %v225 = vld [vmem:[%s3 + $0xb8] sm:$0xff]
    %v226 = vld [vmem:[%s3 + $0xc0] sm:$0xff]
    %v227 = vld [vmem:[%s3 + $0xc8] sm:$0xff]
    %v228 = vld [vmem:[%s3 + $0xd0] sm:$0xff]
    %v229 = vld [vmem:[%s3 + $0xd8] sm:$0xff]
    %v230 = vld [vmem:[%s3 + $0xe0] sm:$0xff]
    %v231 = vld [vmem:[%s3 + $0xe8] sm:$0xff]
    %v232 = vld [vmem:[%s3 + $0xf0] sm:$0xff]
    %v233 = vld [vmem:[%s3 + $0xf8] sm:$0xff]
    %v234 = vld [vmem:[%s3 + $0x100] sm:$0xff]
    %v235 = vld [vmem:[%s3 + $0x108] sm:$0xff]
    %v236 = vld [vmem:[%s3 + $0x110] sm:$0xff]
    %v237 = vld [vmem:[%s3 + $0x118] sm:$0xff]
    %v238 = vld [vmem:[%s3 + $0x120] sm:$0xff]
    %v239 = vld [vmem:[%s3 + $0x128] sm:$0xff]
    %v240 = vld [vmem:[%s3 + $0x130] sm:$0xff]
    %v241 = vld [vmem:[%s3 + $0x138] sm:$0xff]
    %v242 = vld [vmem:[%s3 + $0x140] sm:$0xff]
    %v243 = vld [vmem:[%s3 + $0x148] sm:$0xff]
    %v244 = vld [vmem:[%s3 + $0x150] sm:$0xff]
    %v245 = vld [vmem:[%s3 + $0x158] sm:$0xff]
    %v246 = vld [vmem:[%s3 + $0x160] sm:$0xff]
    %v247 = vld [vmem:[%s3 + $0x168] sm:$0xff]
    %v248 = vld [vmem:[%s3 + $0x170] sm:$0xff]
    %v249 = vld [vmem:[%s3 + $0x178] sm:$0xff]
    %v250 = vld [vmem:[%s3 + $0x180] sm:$0xff]
    %v251 = vld [vmem:[%s3 + $0x188] sm:$0xff]
    %v252 = vld [vmem:[%s3 + $0x190] sm:$0xff]
    %v253 = vld [vmem:[%s3 + $0x198] sm:$0xff]
    %v254 = vld [vmem:[%s3 + $0x1a0] sm:$0xff]
    %v255 = vld [vmem:[%s3 + $0x1a8] sm:$0xff]
    %v256 = vld [vmem:[%s3 + $0x1b0] sm:$0xff]
    %v257 = vld [vmem:[%s3 + $0x1b8] sm:$0xff]
    %v258 = vld [vmem:[%s3 + $0x1c0] sm:$0xff]
    %v259 = vld [vmem:[%s3 + $0x1c8] sm:$0xff]
    %v260 = vld [vmem:[%s3 + $0x1d0] sm:$0xff]
    %v261 = vld [vmem:[%s3 + $0x1d8] sm:$0xff]
    %v262 = vld [vmem:[%s3 + $0x1e0] sm:$0xff]
    %v263 = vld [vmem:[%s3 + $0x1e8] sm:$0xff]
    %v264 = vld [vmem:[%s3 + $0x1f0] sm:$0xff]
    %v265 = vld [vmem:[%s3 + $0x1f8] sm:$0xff]
    %v266 = vld [vmem:[%s4] sm:$0x1]
    %v268 = vlaneseq
    %v269 = vshrl.u32 %v268, 7
    %v270 = vsub.s32 0, %v269
    %v271 = vrot.slane %v266, %v270
    %273 = vmatprep.subr.mxu0 0.0
    %274 = vmatpush1.msra.mxu0 %v202
    %275 = vmatprep.subr.mxu0 0.0
    %276 = vmatpush1.msra.mxu0 %v203
    %277 = vmatprep.subr.mxu0 0.0
    %278 = vmatpush1.msra.mxu0 %v204
    %279 = vmatprep.subr.mxu0 0.0
    %280 = vmatpush1.msra.mxu0 %v205
    %281 = vmatprep.subr.mxu0 0.0
    %282 = vmatpush1.msra.mxu0 %v206
    %283 = vmatprep.subr.mxu0 0.0
    %284 = vmatpush1.msra.mxu0 %v207
    %285 = vmatprep.subr.mxu0 0.0
    %286 = vmatpush1.msra.mxu0 %v208
    %287 = vmatprep.subr.mxu0 0.0
    %288 = vmatpush1.msra.mxu0 %v209
    %289 = vmatprep.subr.mxu0 0.0
    %290 = vmatpush1.msra.mxu0 %v210
    %291 = vmatprep.subr.mxu0 0.0
    %292 = vmatpush1.msra.mxu0 %v211
    %293 = vmatprep.subr.mxu0 0.0
    %294 = vmatpush1.msra.mxu0 %v212
    %295 = vmatprep.subr.mxu0 0.0
    %296 = vmatpush1.msra.mxu0 %v213
    %297 = vmatprep.subr.mxu0 0.0
    %298 = vmatpush1.msra.mxu0 %v214
    %299 = vmatprep.subr.mxu0 0.0
    %300 = vmatpush1.msra.mxu0 %v215
    %301 = vmatprep.subr.mxu0 0.0
    %302 = vmatpush1.msra.mxu0 %v216
    %303 = vmatprep.subr.mxu0 0.0
    %304 = vmatpush1.msra.mxu0 %v217
    %305 = vmatprep.subr.mxu0 0.0
    %306 = vmatpush1.msra.mxu0 %v218
    %307 = vmatprep.subr.mxu0 0.0
    %308 = vmatpush1.msra.mxu0 %v219
    %309 = vmatprep.subr.mxu0 0.0
    %310 = vmatpush1.msra.mxu0 %v220
    %311 = vmatprep.subr.mxu0 0.0
    %312 = vmatpush1.msra.mxu0 %v221
    %313 = vmatprep.subr.mxu0 0.0
    %314 = vmatpush1.msra.mxu0 %v222
    %315 = vmatprep.subr.mxu0 0.0
    %316 = vmatpush1.msra.mxu0 %v223
    %317 = vmatprep.subr.mxu0 0.0
    %318 = vmatpush1.msra.mxu0 %v224
    %319 = vmatprep.subr.mxu0 0.0
    %320 = vmatpush1.msra.mxu0 %v225
    %321 = vmatprep.subr.mxu0 0.0
    %322 = vmatpush1.msra.mxu0 %v226
    %323 = vmatprep.subr.mxu0 0.0
    %324 = vmatpush1.msra.mxu0 %v227
    %325 = vmatprep.subr.mxu0 0.0
    %326 = vmatpush1.msra.mxu0 %v228
    %327 = vmatprep.subr.mxu0 0.0
    %328 = vmatpush1.msra.mxu0 %v229
    %329 = vmatprep.subr.mxu0 0.0
    %330 = vmatpush1.msra.mxu0 %v230
    %331 = vmatprep.subr.mxu0 0.0
    %332 = vmatpush1.msra.mxu0 %v231
    %333 = vmatprep.subr.mxu0 0.0
    %334 = vmatpush1.msra.mxu0 %v232
    %335 = vmatprep.subr.mxu0 0.0
    %336 = vmatpush1.msra.mxu0 %v233
    %337 = vmatprep.mubr.f32.mxu0 %v199
    %338 = vmatmul.mubr.f32.gmra.mrb[0].mxu0 %v198
    %v339 = vpop.f32.mrb[0].mxu0
    %v340 = vadd.f32 %v271, %v339
    %v341 = vpop.f32.mrb[0].mxu0
    %342 = vdwg.mxu0
    %343 = vmatprep.subr.mxu0 0.0
    %344 = vmatpush1.msra.mxu0 %v234
    %345 = vmatprep.subr.mxu0 0.0
    %346 = vmatpush1.msra.mxu0 %v235
    %347 = vmatprep.subr.mxu0 0.0
    %348 = vmatpush1.msra.mxu0 %v236
    %349 = vmatprep.subr.mxu0 0.0
    %350 = vmatpush1.msra.mxu0 %v237
    %351 = vmatprep.subr.mxu0 0.0
    %352 = vmatpush1.msra.mxu0 %v238
    %353 = vmatprep.subr.mxu0 0.0
    %354 = vmatpush1.msra.mxu0 %v239
    %355 = vmatprep.subr.mxu0 0.0
    %356 = vmatpush1.msra.mxu0 %v240
    %357 = vmatprep.subr.mxu0 0.0
    %358 = vmatpush1.msra.mxu0 %v241
    %359 = vmatprep.subr.mxu0 0.0
    %360 = vmatpush1.msra.mxu0 %v242
    %361 = vmatprep.subr.mxu0 0.0
    %362 = vmatpush1.msra.mxu0 %v243
    %363 = vmatprep.subr.mxu0 0.0
    %364 = vmatpush1.msra.mxu0 %v244
    %365 = vmatprep.subr.mxu0 0.0
    %366 = vmatpush1.msra.mxu0 %v245
    %367 = vmatprep.subr.mxu0 0.0
    %368 = vmatpush1.msra.mxu0 %v246
    %369 = vmatprep.subr.mxu0 0.0
    %370 = vmatpush1.msra.mxu0 %v247
    %371 = vmatprep.subr.mxu0 0.0
    %372 = vmatpush1.msra.mxu0 %v248
    %373 = vmatprep.subr.mxu0 0.0
    %374 = vmatpush1.msra.mxu0 %v249
    %375 = vmatprep.subr.mxu0 0.0
    %376 = vmatpush1.msra.mxu0 %v250
    %377 = vmatprep.subr.mxu0 0.0
    %378 = vmatpush1.msra.mxu0 %v251
    %379 = vmatprep.subr.mxu0 0.0
    %380 = vmatpush1.msra.mxu0 %v252
    %381 = vmatprep.subr.mxu0 0.0
    %382 = vmatpush1.msra.mxu0 %v253
    %383 = vmatprep.subr.mxu0 0.0
    %384 = vmatpush1.msra.mxu0 %v254
    %385 = vmatprep.subr.mxu0 0.0
    %386 = vmatpush1.msra.mxu0 %v255
    %387 = vmatprep.subr.mxu0 0.0
    %388 = vmatpush1.msra.mxu0 %v256
    %389 = vmatprep.subr.mxu0 0.0
    %390 = vmatpush1.msra.mxu0 %v257
    %391 = vmatprep.subr.mxu0 0.0
    %392 = vmatpush1.msra.mxu0 %v258
    %393 = vmatprep.subr.mxu0 0.0
    %394 = vmatpush1.msra.mxu0 %v259
    %395 = vmatprep.subr.mxu0 0.0
    %396 = vmatpush1.msra.mxu0 %v260
    %397 = vmatprep.subr.mxu0 0.0
    %398 = vmatpush1.msra.mxu0 %v261
    %399 = vmatprep.subr.mxu0 0.0
    %400 = vmatpush1.msra.mxu0 %v262
    %401 = vmatprep.subr.mxu0 0.0
    %402 = vmatpush1.msra.mxu0 %v263
    %403 = vmatprep.subr.mxu0 0.0
    %404 = vmatpush1.msra.mxu0 %v264
    %405 = vmatprep.subr.mxu0 0.0
    %406 = vmatpush1.msra.mxu0 %v265
    %407 = vmatprep.mubr.f32.mxu0 %v201
    %408 = vmatmul.mubr.f32.gmra.mrb[0].mxu0 %v200
    %v409 = vpop.f32.mrb[0].mxu0
    %v410 = vadd.f32 %v340, %v409
    %v411 = vpop.f32.mrb[0].mxu0
    %412 = vdwg.mxu0
    %413 = vst.msk [vmem:[#allocation2] sm:$0xff] %vm52, %v410
    // Predicated region
    $region22: #{crgnn_forward.1} parent=1 // pred_check
      _
    $region23: #{crgnn_forward.1} parent=1 // pred_check_branch
      %415 = sbr.rel (0) target = $region25
    $region24: #{crgnn_forward.1} parent=1 // pred_region
      %s417 = ssub.s32 128, 128
      %418 = vsyncadd [#allocation3], %s417
      %s420 = sshll.u32 [#allocation2], 4
      %s421 = int_to_ptr.vmem [resolvable:$true] %s420
      %423 = dma.vmem_to_hbm [thread:$0]  %s421, 128, %s5, [#allocation3]
    $region25: #{crgnn_forward.1} parent=1 // pred_fallthru
      _
    // Predicated region
    $region26: #{crgnn_forward.1} parent=1 // pred_check
      _
    $region27: #{crgnn_forward.1} parent=1 // pred_check_branch
      %425 = sbr.rel (0) target = $region29
    $region28: #{crgnn_forward.1} parent=1 // pred_region
      %426 = dma.done [#allocation3], 128
    $region29: #{crgnn_forward.1} parent=1 // pred_fallthru
      _
    %427 = vsyncpa [#allocation3], 1

</llo_original>
